<compile_context>
chip_gen: v5e
topology: v5e:2x2
jax: 0.10.0
libtpu: 0.0.40
codegen_flags: <defaults>
</compile_context>

<pallas_src>
import functools
import math

import jax
import jax.numpy as jnp
from jax.experimental import pallas as pl
from jax.experimental.pallas import tpu as pltpu


def _round_up(a, m):
    return (a + m - 1) // m * m


def _tpu_generation():
    """Best-effort chip-generation detection (7 => 2 TensorCores/chip)."""
    try:
        kind = jax.devices()[0].device_kind.lower()
    except Exception:  # pragma: no cover - defensive
        kind = ""
    if "v7" in kind:
        return 7
    if "v6" in kind:
        return 6
    if "v5" in kind:
        return 5
    return 6


def _fourier_features_kernel(x_ref, wt_ref, out_ref, *, half, use_mxu):
    # x_ref:   (tb, in_features)   VMEM tile of the input
    # wt_ref:  (in_features, half) pre-transposed weight with 2*pi folded in,
    #                              resident (single buffer, constant index_map)
    # out_ref: (tb, 2*half)        out[:, :half] = cos(f), out[:, half:] = sin(f)
    x = x_ref[...]
    wt = wt_ref[...]
    if use_mxu:
        # f = x @ (2*pi * w.T), MXU matmul with f32 accumulation.
        f = jnp.dot(x, wt, preferred_element_type=jnp.float32)
    else:
        # Tiny-K path (in_features <= 8): the MXU K dimension would be <2%
        # utilized, so build f with VPU broadcast multiply-accumulates instead.
        xf = x.astype(jnp.float32)
        wf = wt.astype(jnp.float32)
        f = xf[:, 0:1] * wf[0:1, :]
        for k in range(1, xf.shape[1]):  # static, tiny trip count
            f = f + xf[:, k : k + 1] * wf[k : k + 1, :]
    # Transcendentals in f32 (unbounded phase; bf16 would quantize the angle).
    out_ref[:, :half] = jnp.cos(f).astype(out_ref.dtype)
    out_ref[:, half:] = jnp.sin(f).astype(out_ref.dtype)


def fourier_features(x, weight, *, tb=None):
    """x: (B, in_features), weight: (out_features//2, in_features)."""
    B, in_features = x.shape
    half, in_w = weight.shape
    assert in_w == in_features
    out_features = 2 * half
    out_dtype = x.dtype

    # One-time tiny op outside the kernel: transpose AND fold the 2*pi scale
    # into the weight, so the kernel body is just matmul -> cos/sin -> store.
    wt = (2.0 * math.pi) * weight.T  # (in_features, half)

    gen = _tpu_generation()
    num_cores = 2 if gen >= 7 else 1

    x_bytes = jnp.dtype(x.dtype).itemsize
    out_bytes = jnp.dtype(out_dtype).itemsize
    wt_bytes = jnp.dtype(wt.dtype).itemsize
    # Full-sublane-tile row granularity for both the input and output dtypes.
    sublane_mult = max(32 // x_bytes, 32 // out_bytes, 8)

    if tb is None:
        # Generation-aware VMEM budget for the pipelined blocks.  v7x has half
        # of v6e's physical VMEM (64 MiB) shared design-wise with the second
        # core's working set, so stay modest there; v5e/v6e use a larger budget
        # (vmem_limit_bytes below raises v5e's 16 MiB scoped default).
        budget = (12 if gen >= 7 else 16) * 1024 * 1024

        # Padded-layout accounting (lanes round up to 128, sublanes to 8).
        lanes_x = _round_up(in_features, 128)
        lanes_out = _round_up(out_features, 128)
        lanes_half = _round_up(half, 128)
        w_fixed = _round_up(in_features, 8) * lanes_half * wt_bytes  # resident, 1 buf
        per_row = (
            2 * lanes_x * x_bytes        # x block, double-buffered
            + 2 * lanes_out * out_bytes  # out block, double-buffered
            + 3 * lanes_half * 4         # f / cos / sin f32 temporaries
        )
        avail = max(budget - w_fixed, per_row)
        tb = max(sublane_mult, (avail // per_row) // sublane_mult * sublane_mult)

        if num_cores >= 2 and B >= 2 * sublane_mult:
            # v7x: guarantee >= 2 grid steps so the "parallel" batch axis can be
            # sharded across both TensorCores.
            tb = min(tb, _round_up(pl.cdiv(B, 2), sublane_mult))

        if B <= tb:
            tb = B  # single full block (only reachable on 1-TC chips / tiny B)

    grid = (pl.cdiv(B, tb),)
    use_mxu = in_features > 8

    cost = pl.CostEstimate(
        flops=2 * B * half * in_features,
        transcendentals=2 * B * half,
        bytes_accessed=(
            B * in_features * x_bytes
            + in_features * half * wt_bytes
            + B * out_features * out_bytes
        ),
    )

    out = pl.pallas_call(
        functools.partial(_fourier_features_kernel, half=half, use_mxu=use_mxu),
        out_shape=jax.ShapeDtypeStruct((B, out_features), out_dtype),
        grid_spec=pltpu.PrefetchScalarGridSpec(
            num_scalar_prefetch=0,
            grid=grid,
            in_specs=[
                pl.BlockSpec((tb, in_features), lambda i: (i, 0)),
                # Weight is identical every grid step -> single buffer saves VMEM.
                pl.BlockSpec(
                    (in_features, half),
                    lambda i: (0, 0),
                    pipeline_mode=pl.Buffered(1),
                ),
            ],
            out_specs=pl.BlockSpec((tb, out_features), lambda i: (i, 0)),
        ),
        compiler_params=pltpu.CompilerParams(
            dimension_semantics=("parallel",),
            vmem_limit_bytes=32 * 1024 * 1024,
        ),
        cost_estimate=cost,
    )(x, wt)

    return out


if __name__ == "__main__":
    key = jax.random.PRNGKey(0)
    k_x, k_w = jax.random.split(key)

    batch = 8
    in_features = 4
    out_features = 32  # must be even
    std = 1.0

    # Deterministic "randn * std" init for the weight, matching
    # nn.Parameter(torch.randn([out_features // 2, in_features]) * std).
    weight = std * jax.random.normal(
        k_w, (out_features // 2, in_features), dtype=jnp.float32
    )
    x = jax.random.normal(k_x, (batch, in_features), dtype=jnp.float32)

    out = fourier_features(x, weight)
    out = jax.block_until_ready(out)

    # Reference check in plain JAX.
    f_ref = 2.0 * math.pi * (x @ weight.T)
    ref = jnp.concatenate([jnp.cos(f_ref), jnp.sin(f_ref)], axis=-1)
    assert out.shape == (batch, out_features)
    assert jnp.allclose(out, ref, atol=1e-5, rtol=1e-5)

    print("KERNEL_OK")
</pallas_src>

<mosaic_0001>
module attributes {stable_mosaic.version = 11 : i64} {
  func.func @_fourier_features_kernel(%arg0: i32, %arg1: memref<8x4xf32, #tpu.memory_space<vmem>>, %arg2: memref<4x16xf32, #tpu.memory_space<vmem>>, %arg3: memref<8x32xf32, #tpu.memory_space<vmem>>) attributes {dimension_semantics = [#tpu.dimension_semantics<parallel>], iteration_bounds = array<i64: 1>, scalar_prefetch = 0 : i64, scratch_operands = 0 : i64, tpu.core_type = #tpu.core_type<tc>, window_params = [{transform_indices = @transform_0, window_bounds = array<i64: 8, 4>}, {pipeline_mode = #tpu.pipeline_mode<synchronous>, transform_indices = @transform_1, window_bounds = array<i64: 4, 16>}, {transform_indices = @transform_2, window_bounds = array<i64: 8, 32>}]} {
    %c0 = arith.constant 0 : index
    %c0_0 = arith.constant 0 : index
    %0 = vector.load %arg1[%c0, %c0_0] : memref<8x4xf32, #tpu.memory_space<vmem>>, vector<8x4xf32>
    %c0_1 = arith.constant 0 : index
    %c0_2 = arith.constant 0 : index
    %1 = vector.load %arg2[%c0_1, %c0_2] : memref<4x16xf32, #tpu.memory_space<vmem>>, vector<4x16xf32>
    %2 = vector.extract_strided_slice %0 {offsets = [0, 0], sizes = [8, 1], strides = [1, 1]} : vector<8x4xf32> to vector<8x1xf32>
    %3 = vector.extract_strided_slice %1 {offsets = [0, 0], sizes = [1, 16], strides = [1, 1]} : vector<4x16xf32> to vector<1x16xf32>
    %4 = vector.broadcast %2 : vector<8x1xf32> to vector<8x16xf32>
    %5 = vector.broadcast %3 : vector<1x16xf32> to vector<8x16xf32>
    %6 = arith.mulf %4, %5 : vector<8x16xf32>
    %7 = vector.extract_strided_slice %0 {offsets = [0, 1], sizes = [8, 1], strides = [1, 1]} : vector<8x4xf32> to vector<8x1xf32>
    %8 = vector.extract_strided_slice %1 {offsets = [1, 0], sizes = [1, 16], strides = [1, 1]} : vector<4x16xf32> to vector<1x16xf32>
    %9 = vector.broadcast %7 : vector<8x1xf32> to vector<8x16xf32>
    %10 = vector.broadcast %8 : vector<1x16xf32> to vector<8x16xf32>
    %11 = arith.mulf %9, %10 : vector<8x16xf32>
    %12 = arith.addf %6, %11 : vector<8x16xf32>
    %13 = vector.extract_strided_slice %0 {offsets = [0, 2], sizes = [8, 1], strides = [1, 1]} : vector<8x4xf32> to vector<8x1xf32>
    %14 = vector.extract_strided_slice %1 {offsets = [2, 0], sizes = [1, 16], strides = [1, 1]} : vector<4x16xf32> to vector<1x16xf32>
    %15 = vector.broadcast %13 : vector<8x1xf32> to vector<8x16xf32>
    %16 = vector.broadcast %14 : vector<1x16xf32> to vector<8x16xf32>
    %17 = arith.mulf %15, %16 : vector<8x16xf32>
    %18 = arith.addf %12, %17 : vector<8x16xf32>
    %19 = vector.extract_strided_slice %0 {offsets = [0, 3], sizes = [8, 1], strides = [1, 1]} : vector<8x4xf32> to vector<8x1xf32>
    %20 = vector.extract_strided_slice %1 {offsets = [3, 0], sizes = [1, 16], strides = [1, 1]} : vector<4x16xf32> to vector<1x16xf32>
    %21 = vector.broadcast %19 : vector<8x1xf32> to vector<8x16xf32>
    %22 = vector.broadcast %20 : vector<1x16xf32> to vector<8x16xf32>
    %23 = arith.mulf %21, %22 : vector<8x16xf32>
    %24 = arith.addf %18, %23 : vector<8x16xf32>
    %25 = math.cos %24 : vector<8x16xf32>
    %c0_3 = arith.constant 0 : index
    %c0_4 = arith.constant 0 : index
    %26 = vector.load %arg3[%c0_3, %c0_4] : memref<8x32xf32, #tpu.memory_space<vmem>>, vector<8x16xf32>
    tpu.vector_store %arg3[%c0_3, %c0_4], %25 {strides = array<i32>} : memref<8x32xf32, #tpu.memory_space<vmem>>, vector<8x16xf32>,
    %27 = math.sin %24 : vector<8x16xf32>
    %c0_5 = arith.constant 0 : index
    %c16 = arith.constant 16 : index
    %28 = vector.load %arg3[%c0_5, %c16] : memref<8x32xf32, #tpu.memory_space<vmem>>, vector<8x16xf32>
    tpu.vector_store %arg3[%c0_5, %c16], %27 {strides = array<i32>} : memref<8x32xf32, #tpu.memory_space<vmem>>, vector<8x16xf32>,
    return
  }
  func.func @transform_0(%arg0: i32) -> (i32, i32) {
    %c0_i32 = arith.constant 0 : i32
    %c0_i32_0 = arith.constant 0 : i32
    return %arg0, %c0_i32 : i32, i32
  }
  func.func @transform_1(%arg0: i32) -> (i32, i32) {
    %c0_i32 = arith.constant 0 : i32
    %c0_i32_0 = arith.constant 0 : i32
    %c0_i32_1 = arith.constant 0 : i32
    return %c0_i32, %c0_i32_0 : i32, i32
  }
  func.func @transform_2(%arg0: i32) -> (i32, i32) {
    %c0_i32 = arith.constant 0 : i32
    %c0_i32_0 = arith.constant 0 : i32
    return %arg0, %c0_i32 : i32, i32
  }
}

</mosaic_0001>

<llo_original>
// kernel: tpu_custom_call.1
$region0: #{tpu_custom_call.1}
  #allocation0 [shape = 'u32[]', space=smem, size = 0x4, offset = 0x4, fixed_abs, tag = 'smem constant byte address 0x4 - core index']
  #allocation1 [shape = 'u32[72,128]{1,0:T(1,128)}', space=vmem, size = 0x9000, scoped, tag = 'internal scratch']
  %s0 = inlined_call_operand.vmem [shape: f32[8,4], index: 0, kind: input, shape index: {}]
  %s1 = inlined_call_operand.vmem [shape: f32[4,16], index: 1, kind: input, shape index: {}]
  %s2 = inlined_call_operand.hbm [shape: f32[8,32], index: 2, kind: output, shape index: {}]
  %s3 = sld [smem:[#allocation0]]
  $region18: #{tpu_custom_call.1} parent=0
    _
  %s5 = ssub.s32 1, %s3
  %s6 = scalar_select 0, %s5, %s3
  $region1: #{tpu_custom_call.1} parent=0
    #allocation2 [shape = 'u8[4096]{0}', space=vmem, size = 0x1000, scoped, tag = 'output window, operand 0, single buffered']
    #allocation3 [shape = 's32[1]{0}', space=sflag, size = 0x4, scoped, tag = 'scoped memory for tpu_custom_call.1']
    %7 = vsyncpa [#allocation3], 0
    // Predicated region
    $region2: #{tpu_custom_call.1} parent=1 // pred_check
      _
    $region3: #{tpu_custom_call.1} parent=1 // pred_check_branch
      %9 = sbr.rel (0) target = $region5
    $region4: #{tpu_custom_call.1} parent=1 // pred_region
      _
    $region5: #{tpu_custom_call.1} parent=1 // pred_fallthru
      _
    // Predicated region
    $region6: #{tpu_custom_call.1} parent=1 // pred_check
      _
    $region7: #{tpu_custom_call.1} parent=1 // pred_check_branch
      %11 = sbr.rel (0) target = $region9
    $region8: #{tpu_custom_call.1} parent=1 // pred_region
      _
    $region9: #{tpu_custom_call.1} parent=1 // pred_fallthru
      _
    %v12 = vld [vmem:[%s0] sm:$0xff]
    %v13 = vld [vmem:[%s1] sm:$0xf]
    %15 = vset.pattern.permute.xlu0 0
    %16 = vperm.xlu0 %15, %v12
    %v17 = vpop.permute.xlu0 %16
    %v19 = vperm.slane %v13, 0
    %v20 = vmul.f32 %v17, %v19
    %21 = vset.pattern.permute.xlu0 1
    %22 = vperm.xlu0 %21, %v12
    %v23 = vpop.permute.xlu0 %22
    %v25 = vperm.slane %v13, 1
    %v26 = vmul.f32 %v23, %v25
    %v27 = vadd.f32 %v20, %v26
    %28 = vset.pattern.permute.xlu0 2
    %29 = vperm.xlu0 %28, %v12
    %v30 = vpop.permute.xlu0 %29
    %v32 = vperm.slane %v13, 2
    %v33 = vmul.f32 %v30, %v32
    %v34 = vadd.f32 %v27, %v33
    %35 = vset.pattern.permute.xlu0 3
    %36 = vperm.xlu0 %35, %v12
    %v37 = vpop.permute.xlu0 %36
    %v39 = vperm.slane %v13, 3
    %v40 = vmul.f32 %v37, %v39
    %v41 = vadd.f32 %v34, %v40
    %v42 = vand.u32 2147483647, %v41
    %vm43 = vcmp.le.f32.partialorder %v42, 0.7853982
    %vm44 = vcmp.lt.s32.totalorder %v41, 0
    %v45 = vand.u32 %v41, 2139095040
    %v46 = vshrl.u32 %v45, 23
    %v47 = vsub.s32 %v46, 127
    %v48 = vand.u32 2147483647, %v41
    %v49 = vand.u32 %v48, 8388607
    %v50 = vor.u32 %v49, 8388608
    %v51 = vsub.s32 0, %v50
    %v52 = vadd.s32 %v47, 1
    %vm53 = vcmp.gt.s32.totalorder %v52, 0
    %v54 = vsel %vm53, %v52, 0
    %v55 = vshrl.u32 %v54, 5
    %v56 = vand.u32 %v54, 31
    %v57 = vsub.s32 32, %v56
    %v58 = vshrl.u32 683565275, %v57
    %v59 = vshll.u32 683565275, %v56
    %v60 = vshrl.u32 2475754826, %v57
    %v61 = vor.u32 %v59, %v60
    %v62 = vshll.u32 2475754826, %v56
    %v63 = vshrl.u32 2131351028, %v57
    %v64 = vor.u32 %v62, %v63
    %v65 = vshll.u32 2131351028, %v56
    %v66 = vshrl.u32 2102212464, %v57
    %v67 = vor.u32 %v65, %v66
    %v68 = vshll.u32 2102212464, %v56
    %v69 = vshrl.u32 920167782, %v57
    %v70 = vor.u32 %v68, %v69
    %v71 = vshll.u32 920167782, %v56
    %v72 = vshrl.u32 1326507024, %v57
    %v73 = vor.u32 %v71, %v72
    %vm74 = vcmp.lt.s32.totalorder %v55, 1
    %vm75 = vcmp.lt.s32.totalorder %v55, 2
    %vm76 = vcmp.lt.s32.totalorder %v55, 3
    %vm77 = vcmp.lt.s32.totalorder %v55, 4
    %v78 = vsel %vm74, %v58, %v61
    %v79 = vsel %vm77, %v67, 2102212464
    %v80 = vsel %vm76, %v64, %v79
    %v81 = vsel %vm75, %v78, %v80
    %v82 = vsel %vm74, %v61, %v64
    %v83 = vsel %vm77, %v70, 920167782
    %v84 = vsel %vm76, %v67, %v83
    %v85 = vsel %vm75, %v82, %v84
    %v86 = vsel %vm74, %v64, %v67
    %v87 = vsel %vm77, %v73, 1326507024
    %v88 = vsel %vm76, %v70, %v87
    %v89 = vsel %vm75, %v86, %v88
    %v90 = vshll.u32 %v50, 8
    %v91 = vand.u32 %v90, 65535
    %v92 = vshrl.u32 %v90, 16
    %v93 = vand.u32 %v89, 65535
    %v94 = vshrl.u32 %v89, 16
    %v95 = vmul.u32 %v91, %v93
    %v96 = vmul.u32 %v91, %v94
    %v97 = vmul.u32 %v92, %v93
    %v98 = vmul.u32 %v92, %v94
    %v99 = vshll.u32 %v96, 16
    %v100 = vshrl.u32 %v96, 16
    %v101 = vshll.u32 %v97, 16
    %v102 = vshrl.u32 %v97, 16
    %vm103 = vc.u32 %v95, %v99
    %v104 = vsel %vm103, 1, 0
    %v105 = vadd.s32 %v95, %v99
    %v106 = vadd.s32 %v98, %v104
    %vm107 = vc.u32 %v105, %v101
    %v108 = vsel %vm107, 1, 0
    %v109 = vadd.s32 %v105, %v101
    %v110 = vadd.s32 %v106, %v108
    %v111 = vadd.s32 %v110, %v100
    %v112 = vadd.s32 %v111, %v102
    %v113 = vand.u32 %v90, 65535
    %v114 = vshrl.u32 %v90, 16
    %v115 = vand.u32 %v85, 65535
    %v116 = vshrl.u32 %v85, 16
    %v117 = vmul.u32 %v113, %v115
    %v118 = vmul.u32 %v113, %v116
    %v119 = vmul.u32 %v114, %v115
    %v120 = vmul.u32 %v114, %v116
    %v121 = vshll.u32 %v118, 16
    %v122 = vshrl.u32 %v118, 16
    %v123 = vshll.u32 %v119, 16
    %v124 = vshrl.u32 %v119, 16
    %vm125 = vc.u32 %v117, %v121
    %v126 = vsel %vm125, 1, 0
    %v127 = vadd.s32 %v117, %v121
    %v128 = vadd.s32 %v120, %v126
    %vm129 = vc.u32 %v127, %v123
    %v130 = vsel %vm129, 1, 0
    %v131 = vadd.s32 %v127, %v123
    %v132 = vadd.s32 %v128, %v130
    %v133 = vadd.s32 %v132, %v122
    %v134 = vadd.s32 %v133, %v124
    %v135 = vmul.u32 %v90, %v81
    %v136 = vadd.s32 %v112, %v131
    %vm137 = vc.u32 %v112, %v131
    %v138 = vadd.s32 %v134, 1
    %v139 = vsel %vm137, %v138, %v134
    %v140 = vadd.s32 %v135, %v139
    %v141 = vadd.s32 %v140, 536870912
    %v142 = vshrl.u32 %v141, 30
    %v143 = vshll.u32 %v142, 30
    %v144 = vsub.s32 %v140, %v143
    %vm145 = vcmp.lt.s32.totalorder %v144, 0
    %v146 = vsub.s32 0, %v144
    %v147 = vsel %vm145, %v146, %v144
    %v148 = vclz %v147
    %v149 = vsub.s32 %v148, 2
    %vm150 = vcmp.gt.s32.totalorder 0, %v149
    %v151 = vsel %vm150, 0, %v149
    %v152 = vsub.s32 32, %v151
    %v153 = vshll.u32 %v144, %v151
    %v154 = vshrl.u32 %v136, %v152
    %v155 = vor.u32 %v153, %v154
    %v156 = vsub.s32 4294967266, %v151
    %v157 = vadd.s32 %v156, 127
    %v158 = vshll.u32 %v157, 23
    %v159 = vor.u32 4788187, %v158
    %v160 = vand.u32 2147483647, %v159
    %v162 = vcvt.s32.f32 %v155
    %v163 = vmul.f32 %v162, %v160
    %v164 = vxor.u32 %v163, 2147483648
    %v165 = vsel %vm44, %v164, %v163
    %v166 = vsub.s32 4, %v142
    %v167 = vsel %vm44, %v166, %v142
    %v168 = vsel %vm43, %v41, %v165
    %v169 = vsel %vm43, 0, %v167
    %v170 = vmul.f32 %v168, %v168
    %v171 = vmul.f32 %v170, -0.001358992
    %v172 = vadd.f32 %v171, 0.041655596
    %v173 = vmul.f32 %v170, %v172
    %v174 = vadd.f32 %v173, -0.4999988
    %v175 = vmul.f32 %v170, %v174
    %v176 = vadd.f32 1.0, %v175
    %v177 = vmul.f32 %v168, %v168
    %v178 = vmul.f32 %v177, -0.00019511016
    %v179 = vadd.f32 %v178, 0.008332121
    %v180 = vmul.f32 %v177, %v179
    %v181 = vadd.f32 %v180, -0.16666654
    %v182 = vmul.f32 %v177, %v181
    %v183 = vadd.f32 %v182, 1.0
    %v184 = vmul.f32 %v183, %v168
    %vm185 = vweird.f32 %v41
    %v186 = vand.u32 %v169, 3
    %vm187 = vcmp.lt.s32.totalorder %v186, 2
    %vm188 = vcmp.eq.s32.totalorder %v186, 0
    %v189 = vxor.u32 %v184, 2147483648
    %v190 = vsel %vm188, %v176, %v189
    %vm191 = vcmp.eq.s32.totalorder %v186, 2
    %v192 = vxor.u32 %v176, 2147483648
    %v193 = vsel %vm191, %v192, %v184
    %v194 = vsel %vm187, %v190, %v193
    %v195 = vsel %vm185, nan, %v194
    %vm196 = vcmask 130048
    %197 = vst.msk [vmem:[#allocation2] sm:$0xff] %vm196, %v195
    %v198 = vand.u32 2147483647, %v41
    %vm199 = vcmp.le.f32.partialorder %v198, 0.7853982
    %vm200 = vcmp.lt.s32.totalorder %v41, 0
    %v201 = vand.u32 %v41, 2139095040
    %v202 = vshrl.u32 %v201, 23
    %v203 = vsub.s32 %v202, 127
    %v204 = vand.u32 2147483647, %v41
    %v205 = vand.u32 %v204, 8388607
    %v206 = vor.u32 %v205, 8388608
    %v207 = vsub.s32 0, %v206
    %v208 = vadd.s32 %v203, 1
    %vm209 = vcmp.gt.s32.totalorder %v208, 0
    %v210 = vsel %vm209, %v208, 0
    %v211 = vshrl.u32 %v210, 5
    %v212 = vand.u32 %v210, 31
    %v213 = vsub.s32 32, %v212
    %v214 = vshrl.u32 683565275, %v213
    %v215 = vshll.u32 683565275, %v212
    %v216 = vshrl.u32 2475754826, %v213
    %v217 = vor.u32 %v215, %v216
    %v218 = vshll.u32 2475754826, %v212
    %v219 = vshrl.u32 2131351028, %v213
    %v220 = vor.u32 %v218, %v219
    %v221 = vshll.u32 2131351028, %v212
    %v222 = vshrl.u32 2102212464, %v213
    %v223 = vor.u32 %v221, %v222
    %v224 = vshll.u32 2102212464, %v212
    %v225 = vshrl.u32 920167782, %v213
    %v226 = vor.u32 %v224, %v225
    %v227 = vshll.u32 920167782, %v212
    %v228 = vshrl.u32 1326507024, %v213
    %v229 = vor.u32 %v227, %v228
    %vm230 = vcmp.lt.s32.totalorder %v211, 1
    %vm231 = vcmp.lt.s32.totalorder %v211, 2
    %vm232 = vcmp.lt.s32.totalorder %v211, 3
    %vm233 = vcmp.lt.s32.totalorder %v211, 4
    %v234 = vsel %vm230, %v214, %v217
    %v235 = vsel %vm233, %v223, 2102212464
    %v236 = vsel %vm232, %v220, %v235
    %v237 = vsel %vm231, %v234, %v236
    %v238 = vsel %vm230, %v217, %v220
    %v239 = vsel %vm233, %v226, 920167782
    %v240 = vsel %vm232, %v223, %v239
    %v241 = vsel %vm231, %v238, %v240
    %v242 = vsel %vm230, %v220, %v223
    %v243 = vsel %vm233, %v229, 1326507024
    %v244 = vsel %vm232, %v226, %v243
    %v245 = vsel %vm231, %v242, %v244
    %v246 = vshll.u32 %v206, 8
    %v247 = vand.u32 %v246, 65535
    %v248 = vshrl.u32 %v246, 16
    %v249 = vand.u32 %v245, 65535
    %v250 = vshrl.u32 %v245, 16
    %v251 = vmul.u32 %v247, %v249
    %v252 = vmul.u32 %v247, %v250
    %v253 = vmul.u32 %v248, %v249
    %v254 = vmul.u32 %v248, %v250
    %v255 = vshll.u32 %v252, 16
    %v256 = vshrl.u32 %v252, 16
    %v257 = vshll.u32 %v253, 16
    %v258 = vshrl.u32 %v253, 16
    %vm259 = vc.u32 %v251, %v255
    %v260 = vsel %vm259, 1, 0
    %v261 = vadd.s32 %v251, %v255
    %v262 = vadd.s32 %v254, %v260
    %vm263 = vc.u32 %v261, %v257
    %v264 = vsel %vm263, 1, 0
    %v265 = vadd.s32 %v261, %v257
    %v266 = vadd.s32 %v262, %v264
    %v267 = vadd.s32 %v266, %v256
    %v268 = vadd.s32 %v267, %v258
    %v269 = vand.u32 %v246, 65535
    %v270 = vshrl.u32 %v246, 16
    %v271 = vand.u32 %v241, 65535
    %v272 = vshrl.u32 %v241, 16
    %v273 = vmul.u32 %v269, %v271
    %v274 = vmul.u32 %v269, %v272
    %v275 = vmul.u32 %v270, %v271
    %v276 = vmul.u32 %v270, %v272
    %v277 = vshll.u32 %v274, 16
    %v278 = vshrl.u32 %v274, 16
    %v279 = vshll.u32 %v275, 16
    %v280 = vshrl.u32 %v275, 16
    %vm281 = vc.u32 %v273, %v277
    %v282 = vsel %vm281, 1, 0
    %v283 = vadd.s32 %v273, %v277
    %v284 = vadd.s32 %v276, %v282
    %vm285 = vc.u32 %v283, %v279
    %v286 = vsel %vm285, 1, 0
    %v287 = vadd.s32 %v283, %v279
    %v288 = vadd.s32 %v284, %v286
    %v289 = vadd.s32 %v288, %v278
    %v290 = vadd.s32 %v289, %v280
    %v291 = vmul.u32 %v246, %v237
    %v292 = vadd.s32 %v268, %v287
    %vm293 = vc.u32 %v268, %v287
    %v294 = vadd.s32 %v290, 1
    %v295 = vsel %vm293, %v294, %v290
    %v296 = vadd.s32 %v291, %v295
    %v297 = vadd.s32 %v296, 536870912
    %v298 = vshrl.u32 %v297, 30
    %v299 = vshll.u32 %v298, 30
    %v300 = vsub.s32 %v296, %v299
    %vm301 = vcmp.lt.s32.totalorder %v300, 0
    %v302 = vsub.s32 0, %v300
    %v303 = vsel %vm301, %v302, %v300
    %v304 = vclz %v303
    %v305 = vsub.s32 %v304, 2
    %vm306 = vcmp.gt.s32.totalorder 0, %v305
    %v307 = vsel %vm306, 0, %v305
    %v308 = vsub.s32 32, %v307
    %v309 = vshll.u32 %v300, %v307
    %v310 = vshrl.u32 %v292, %v308
    %v311 = vor.u32 %v309, %v310
    %v312 = vsub.s32 4294967266, %v307
    %v313 = vadd.s32 %v312, 127
    %v314 = vshll.u32 %v313, 23
    %v315 = vor.u32 4788187, %v314
    %v316 = vand.u32 2147483647, %v315
    %v318 = vcvt.s32.f32 %v311
    %v319 = vmul.f32 %v318, %v316
    %v320 = vxor.u32 %v319, 2147483648
    %v321 = vsel %vm200, %v320, %v319
    %v322 = vsub.s32 4, %v298
    %v323 = vsel %vm200, %v322, %v298
    %v324 = vsel %vm199, %v41, %v321
    %v325 = vsel %vm199, 0, %v323
    %v326 = vmul.f32 %v324, %v324
    %v327 = vmul.f32 %v326, -0.001358992
    %v328 = vadd.f32 %v327, 0.041655596
    %v329 = vmul.f32 %v326, %v328
    %v330 = vadd.f32 %v329, -0.4999988
    %v331 = vmul.f32 %v326, %v330
    %v332 = vadd.f32 1.0, %v331
    %v333 = vmul.f32 %v324, %v324
    %v334 = vmul.f32 %v333, -0.00019511016
    %v335 = vadd.f32 %v334, 0.008332121
    %v336 = vmul.f32 %v333, %v335
    %v337 = vadd.f32 %v336, -0.16666654
    %v338 = vmul.f32 %v333, %v337
    %v339 = vadd.f32 %v338, 1.0
    %v340 = vmul.f32 %v339, %v324
    %vm341 = vweird.f32 %v41
    %v342 = vadd.s32 %v325, 3
    %v343 = vand.u32 %v342, 3
    %vm344 = vcmp.lt.s32.totalorder %v343, 2
    %vm345 = vcmp.eq.s32.totalorder %v343, 0
    %v346 = vxor.u32 %v340, 2147483648
    %v347 = vsel %vm345, %v332, %v346
    %vm348 = vcmp.eq.s32.totalorder %v343, 2
    %v349 = vxor.u32 %v332, 2147483648
    %v350 = vsel %vm348, %v349, %v340
    %v351 = vsel %vm344, %v347, %v350
    %v352 = vsel %vm341, nan, %v351
    %354 = vrot.lane.b32.xlu0 %v352, 16
    %v355 = vpop.permute.xlu0 %354
    %vm357 = vcmask 261248
    %358 = vst.msk [vmem:[#allocation2] sm:$0xff] %vm357, %v355
    // Predicated region
    $region10: #{tpu_custom_call.1} parent=1 // pred_check
      _
    $region11: #{tpu_custom_call.1} parent=1 // pred_check_branch
      %360 = sbr.rel (0) target = $region13
    $region12: #{tpu_custom_call.1} parent=1 // pred_region
      %362 = vsyncadd [#allocation3], 0
      %s364 = sshll.u32 [#allocation2], 4
      %s365 = int_to_ptr.vmem [resolvable:$true] %s364
      %s366 = sshll.u32 %s2, 4
      %s367 = int_to_ptr.hbm [resolvable:$true] %s366
      %369 = dma.vmem_to_hbm [thread:$0]  %s365, 128, %s367, [#allocation3]
    $region13: #{tpu_custom_call.1} parent=1 // pred_fallthru
      _
    // Predicated region
    $region14: #{tpu_custom_call.1} parent=1 // pred_check
      _
    $region15: #{tpu_custom_call.1} parent=1 // pred_check_branch
      %371 = sbr.rel (0) target = $region17
    $region16: #{tpu_custom_call.1} parent=1 // pred_region
      %373 = dma.done [#allocation3], 128
    $region17: #{tpu_custom_call.1} parent=1 // pred_fallthru
      _
    %374 = vsyncpa [#allocation3], 1

</llo_original>
